<compile_context>
chip_gen: v6e
topology: v6e:2x2x1
jax: 0.10.0
libtpu: 0.0.40
codegen_flags: <defaults>
</compile_context>

<pallas_src>
import jax
import jax.numpy as jnp
from jax.experimental import pallas as pl
from jax.experimental.pallas import tpu as pltpu

K_TAPS = 27       # 3x3x3 submanifold kernel taps
K_PAD = 32        # taps padded 27 -> 32 so the contraction dim C*K_PAD is a multiple of 128
PREF_TILE = 512   # preferred voxel tile (lanes); large tiles amortize per-grid-step overhead


# ----------------------------- Pallas kernels ------------------------------

def _matmul_bias_relu_kernel(a_ref, w_ref, b_ref, o_ref):
    # o = relu(W_T @ A_T + bias)    all blocks lane-dense: [Cout, TN]
    acc = jnp.dot(w_ref[...], a_ref[...], preferred_element_type=jnp.float32)
    o_ref[...] = jnp.maximum(acc + b_ref[...], 0.0)


def _matmul_bias_add_relu_kernel(a_ref, w_ref, b_ref, r_ref, o_ref):
    # o = relu(W_T @ A_T + bias + residual_T)
    acc = jnp.dot(w_ref[...], a_ref[...], preferred_element_type=jnp.float32)
    o_ref[...] = jnp.maximum(acc + b_ref[...] + r_ref[...], 0.0)


def fused_conv_bn_relu_T(aT, wT, bias_col, residualT=None, *, tn):
    """aT: [kc, Npad] bf16 (gathered activations, transposed), wT: [Cout, kc] bf16 with the
    BN scale folded in, bias_col: [Cout, 1] f32, residualT: [Cout, Npad] f32 (optional).
    Returns [Cout, Npad] f32."""
    kc, npad = aT.shape
    cout = wT.shape[0]
    assert npad % tn == 0 and tn % 128 == 0 and kc % 8 == 0

    in_specs = [
        pl.BlockSpec((kc, tn), lambda i: (0, i)),      # activation tile (streamed over grid)
        pl.BlockSpec((cout, kc), lambda i: (0, 0)),    # folded weights (VMEM-resident)
        pl.BlockSpec((cout, 1), lambda i: (0, 0)),     # folded BN bias (VMEM-resident)
    ]
    args = [aT, wT, bias_col]
    kernel = _matmul_bias_relu_kernel
    if residualT is not None:
        in_specs.append(pl.BlockSpec((cout, tn), lambda i: (0, i)))
        args.append(residualT)
        kernel = _matmul_bias_add_relu_kernel

    return pl.pallas_call(
        kernel,
        out_shape=jax.ShapeDtypeStruct((cout, npad), jnp.float32),
        grid_spec=pltpu.PrefetchScalarGridSpec(
            num_scalar_prefetch=0,
            grid=(npad // tn,),
            in_specs=in_specs,
            out_specs=pl.BlockSpec((cout, tn), lambda i: (0, i)),
        ),
        compiler_params=pltpu.CompilerParams(dimension_semantics=("parallel",)),
    )(*args)


# ------------------------- sparse-conv rulebook glue ------------------------

def _round_up(x, m):
    return ((x + m - 1) // m) * m


def _pick_tiling(n):
    """Pick (npad, tile) so tile is large (amortize grid-step overhead) but the grid keeps
    >= 2 parallel steps whenever possible (both v7x TensorCores busy)."""
    npad = _round_up(n, 128)
    if npad >= 2 * PREF_TILE:
        return _round_up(n, PREF_TILE), PREF_TILE
    if npad >= 256:
        return npad, 128
    return npad, npad


def build_neighbor_rows(indices, grid_shape):
    """Row index of each of the 27 (3x3x3) neighbors per active voxel, -1 if inactive."""
    B, D, H, W = grid_shape
    n = indices.shape[0]
    b, z, y, x = indices[:, 0], indices[:, 1], indices[:, 2], indices[:, 3]
    flat = ((b * D + z) * H + y) * W + x
    idx_grid = jnp.full((B * D * H * W,), -1, dtype=jnp.int32).at[flat].set(
        jnp.arange(n, dtype=jnp.int32))

    rows = []
    for dz in (-1, 0, 1):
        for dy in (-1, 0, 1):
            for dx in (-1, 0, 1):
                zn, yn, xn = z + dz, y + dy, x + dx
                inb = (zn >= 0) & (zn < D) & (yn >= 0) & (yn < H) & (xn >= 0) & (xn < W)
                zc = jnp.clip(zn, 0, D - 1)
                yc = jnp.clip(yn, 0, H - 1)
                xc = jnp.clip(xn, 0, W - 1)
                f = ((b * D + zc) * H + yc) * W + xc
                rows.append(jnp.where(inb, idx_grid[f], -1))
    return jnp.stack(rows, axis=1)  # [N, 27] int32


def pad_rows_table(rows, npad):
    """[N, 27] -> [Npad, 32] padded with -1 (dummy taps + dummy voxels are masked to zero)."""
    n = rows.shape[0]
    out = jnp.full((npad, K_PAD), -1, dtype=jnp.int32)
    return out.at[:n, :K_TAPS].set(rows)


def gather_neighbors_T(featsT, rows_p):
    """featsT: [C, Npad] f32 feature table (channel-major), rows_p: [Npad, K_PAD] int32.
    Returns A_T: [C*K_PAD, Npad] bf16 with contraction index c*K_PAD + tap."""
    rowsT = rows_p.T                                                 # [K_PAD, Npad]
    g = jnp.take(featsT, jnp.maximum(rowsT, 0), axis=1)             # [C, K_PAD, Npad]
    g = jnp.where(rowsT[None, :, :] >= 0, g, 0.0)
    c, kp, npad = g.shape
    return g.reshape(c * kp, npad).astype(jnp.bfloat16)


def fold_bn(gamma, beta, mean, var, eps=1e-5):
    scale = gamma / jnp.sqrt(var + eps)
    bias = beta - mean * scale
    return scale, bias


def prep_weight_T(w, scale, cin, cout):
    """w: [27*Cin, Cout] with contraction index tap*Cin + c (reference layout).
    Returns W_T: [Cout, Cin*K_PAD] bf16 in the kernel's c-major / tap-padded layout,
    with the BN scale folded in."""
    w_kc = w.reshape(K_TAPS, cin, cout)
    w_ck = jnp.transpose(w_kc, (1, 0, 2))                            # [Cin, 27, Cout]
    w_ck = jnp.pad(w_ck, ((0, 0), (0, K_PAD - K_TAPS), (0, 0)))      # [Cin, 32, Cout]
    w_flat = w_ck.reshape(cin * K_PAD, cout) * scale[None, :]
    return jnp.transpose(w_flat).astype(jnp.bfloat16)                # [Cout, Cin*32]


# --------------------------------- BasicBlock -------------------------------

def basic_block_forward(features, indices, grid_shape, params):
    """BasicBlock.forward with conv_type='common', downsample=None, eval-mode BatchNorm1d."""
    n, cin = features.shape
    cout = params["w1"].shape[1]
    # residual add of raw input requires inplanes == planes (downsample=None)
    assert cin == cout and params["w2"].shape == (K_TAPS * cout, cout)

    npad, tn = _pick_tiling(n)
    rows_p = pad_rows_table(build_neighbor_rows(indices, grid_shape), npad)

    # channel-major, lane-padded feature table; also reused (transposed) as the residual
    featsT = jnp.pad(jnp.transpose(features), ((0, 0), (0, npad - n)))   # [Cin, Npad] f32

    s1, b1 = fold_bn(params["gamma1"], params["beta1"], params["mean1"], params["var1"])
    s2, b2 = fold_bn(params["gamma2"], params["beta2"], params["mean2"], params["var2"])
    w1T = prep_weight_T(params["w1"], s1, cin, cout)
    w2T = prep_weight_T(params["w2"], s2, cout, cout)

    # conv1 -> norm1 -> relu           (output stays in [C, Npad] layout for conv2's gather)
    a1T = gather_neighbors_T(featsT, rows_p)
    f1T = fused_conv_bn_relu_T(a1T, w1T, b1.reshape(cout, 1), tn=tn)

    # conv2 -> norm2 -> +residual -> relu
    a2T = gather_neighbors_T(f1T, rows_p)
    out2T = fused_conv_bn_relu_T(a2T, w2T, b2.reshape(cout, 1), residualT=featsT, tn=tn)

    return jnp.transpose(out2T[:, :n])                               # [N, Cout]


# pure-JAX f32 reference (original row-major formulation) for sanity checking
def _gather_neighbors_ref(feats, rows):
    safe = jnp.maximum(rows, 0)
    g = feats[safe]
    g = jnp.where(rows[..., None] >= 0, g, 0.0)
    return g.reshape(rows.shape[0], -1)


def basic_block_reference(features, indices, grid_shape, params):
    rows = build_neighbor_rows(indices, grid_shape)
    s1, b1 = fold_bn(params["gamma1"], params["beta1"], params["mean1"], params["var1"])
    s2, b2 = fold_bn(params["gamma2"], params["beta2"], params["mean2"], params["var2"])
    f1 = jnp.maximum(_gather_neighbors_ref(features, rows) @ params["w1"] * s1 + b1, 0.0)
    out = _gather_neighbors_ref(f1, rows) @ params["w2"] * s2 + b2 + features
    return jnp.maximum(out, 0.0)


# ----------------------------------- main ------------------------------------

if __name__ == "__main__":
    key = jax.random.PRNGKey(0)
    B, D, H, W = 2, 8, 8, 8
    inplanes = planes = 8           # downsample=None => inplanes == planes
    K = K_TAPS                      # kernel_size = (3, 3)
    n_per_batch = 100
    N = B * n_per_batch

    # deterministic, unique active-voxel coordinates per batch
    keys = jax.random.split(key, 16)
    coords = []
    for bidx in range(B):
        flat = jax.random.choice(keys[bidx], D * H * W, (n_per_batch,), replace=False)
        z = flat // (H * W)
        y = (flat // W) % H
        x = flat % W
        bcol = jnp.full((n_per_batch,), bidx, dtype=jnp.int32)
        coords.append(jnp.stack([bcol, z.astype(jnp.int32), y.astype(jnp.int32),
                                 x.astype(jnp.int32)], axis=1))
    indices = jnp.concatenate(coords, axis=0)                        # [N, 4]
    features = jax.random.normal(keys[2], (N, inplanes), jnp.float32)

    # deterministic parameters (shapes implied by SubMConv3d / BatchNorm1d in __init__)
    params = {
        "w1": 0.1 * jax.random.normal(keys[3], (K * inplanes, planes), jnp.float32),
        "w2": 0.1 * jax.random.normal(keys[4], (K * planes, planes), jnp.float32),
        "gamma1": 1.0 + 0.1 * jax.random.normal(keys[5], (planes,), jnp.float32),
        "beta1": 0.1 * jax.random.normal(keys[6], (planes,), jnp.float32),
        "mean1": 0.1 * jax.random.normal(keys[7], (planes,), jnp.float32),
        "var1": 0.5 + jax.random.uniform(keys[8], (planes,), jnp.float32),
        "gamma2": 1.0 + 0.1 * jax.random.normal(keys[9], (planes,), jnp.float32),
        "beta2": 0.1 * jax.random.normal(keys[10], (planes,), jnp.float32),
        "mean2": 0.1 * jax.random.normal(keys[11], (planes,), jnp.float32),
        "var2": 0.5 + jax.random.uniform(keys[12], (planes,), jnp.float32),
    }

    out = basic_block_forward(features, indices, (B, D, H, W), params)
    out = jax.block_until_ready(out)

    ref = basic_block_reference(features, indices, (B, D, H, W), params)
    assert out.shape == (N, planes)
    # bf16 MXU inputs (f32 accumulate) vs. the f32 reference => looser tolerance
    assert jnp.allclose(out, ref, atol=5e-2, rtol=5e-2)

    print("KERNEL_OK")
</pallas_src>

<mosaic_0001>
module attributes {stable_mosaic.version = 11 : i64} {
  func.func @_matmul_bias_relu_kernel(%arg0: i32, %arg1: memref<256x128xbf16, #tpu.memory_space<vmem>>, %arg2: memref<8x256xbf16, #tpu.memory_space<vmem>>, %arg3: memref<8x1xf32, #tpu.memory_space<vmem>>, %arg4: memref<8x128xf32, #tpu.memory_space<vmem>>) attributes {dimension_semantics = [#tpu.dimension_semantics<parallel>], iteration_bounds = array<i64: 2>, scalar_prefetch = 0 : i64, scratch_operands = 0 : i64, tpu.core_type = #tpu.core_type<tc>, window_params = [{transform_indices = @transform_0, window_bounds = array<i64: 256, 128>}, {pipeline_mode = #tpu.pipeline_mode<synchronous>, transform_indices = @transform_1, window_bounds = array<i64: 8, 256>}, {pipeline_mode = #tpu.pipeline_mode<synchronous>, transform_indices = @transform_2, window_bounds = array<i64: 8, 1>}, {transform_indices = @transform_3, window_bounds = array<i64: 8, 128>}]} {
    %c0 = arith.constant 0 : index
    %c0_0 = arith.constant 0 : index
    %0 = vector.load %arg2[%c0, %c0_0] : memref<8x256xbf16, #tpu.memory_space<vmem>>, vector<8x256xbf16>
    %c0_1 = arith.constant 0 : index
    %c0_2 = arith.constant 0 : index
    %1 = vector.load %arg1[%c0_1, %c0_2] : memref<256x128xbf16, #tpu.memory_space<vmem>>, vector<256x128xbf16>
    %cst = arith.constant dense<0.000000e+00> : vector<8x128xf32>
    %2 = tpu.matmul %0, %1, %cst {dimension_numbers = #tpu.dot_dimension_numbers<[1], [0], [0], [1], [0, 0, 1, 1], [], []>} : vector<8x256xbf16>, vector<256x128xbf16>, vector<8x128xf32> -> vector<8x128xf32>
    %c0_3 = arith.constant 0 : index
    %c0_4 = arith.constant 0 : index
    %3 = vector.load %arg3[%c0_3, %c0_4] : memref<8x1xf32, #tpu.memory_space<vmem>>, vector<8x1xf32>
    %4 = vector.broadcast %3 : vector<8x1xf32> to vector<8x128xf32>
    %5 = arith.addf %2, %4 : vector<8x128xf32>
    %cst_5 = arith.constant 0.000000e+00 : f32
    %6 = vector.broadcast %cst_5 : f32 to vector<8x128xf32>
    %7 = arith.maximumf %5, %6 : vector<8x128xf32>
    %c0_6 = arith.constant 0 : index
    %c0_7 = arith.constant 0 : index
    %8 = vector.load %arg4[%c0_6, %c0_7] : memref<8x128xf32, #tpu.memory_space<vmem>>, vector<8x128xf32>
    tpu.vector_store %arg4[%c0_6, %c0_7], %7 {strides = array<i32>} : memref<8x128xf32, #tpu.memory_space<vmem>>, vector<8x128xf32>,
    return
  }
  func.func @transform_0(%arg0: i32) -> (i32, i32) {
    %c0_i32 = arith.constant 0 : i32
    %c0_i32_0 = arith.constant 0 : i32
    return %c0_i32, %arg0 : i32, i32
  }
  func.func @transform_1(%arg0: i32) -> (i32, i32) {
    %c0_i32 = arith.constant 0 : i32
    %c0_i32_0 = arith.constant 0 : i32
    %c0_i32_1 = arith.constant 0 : i32
    return %c0_i32, %c0_i32_0 : i32, i32
  }
  func.func @transform_2(%arg0: i32) -> (i32, i32) {
    %c0_i32 = arith.constant 0 : i32
    %c0_i32_0 = arith.constant 0 : i32
    %c0_i32_1 = arith.constant 0 : i32
    return %c0_i32, %c0_i32_0 : i32, i32
  }
  func.func @transform_3(%arg0: i32) -> (i32, i32) {
    %c0_i32 = arith.constant 0 : i32
    %c0_i32_0 = arith.constant 0 : i32
    return %c0_i32, %arg0 : i32, i32
  }
}

</mosaic_0001>

<llo_original>
// kernel: tpu_custom_call.1
$region0: #{tpu_custom_call.1}
  #allocation0 [shape = 'u32[]', space=smem, size = 0x4, offset = 0x4, fixed_abs, tag = 'smem constant byte address 0x4 - core index']
  #allocation1 [shape = 'u32[144,128]{1,0:T(1,128)}', space=vmem, size = 0x12000, scoped, tag = 'internal scratch']
  %s0 = inlined_call_operand.hbm [shape: bf16[256,256], index: 0, kind: input, shape index: {}]
  %s1 = inlined_call_operand.vmem [shape: bf16[8,256], index: 1, kind: input, shape index: {}]
  %s2 = inlined_call_operand.vmem [shape: f32[8,1], index: 2, kind: input, shape index: {}]
  %s3 = inlined_call_operand.hbm [shape: f32[8,256], index: 3, kind: output, shape index: {}]
  %s4 = sld [smem:[#allocation0]]
  $region49: #{tpu_custom_call.1} parent=0
    _
  %s6 = ssub.s32 1, %s4
  %s7 = scalar_select 0, %s6, %s4
  $region1: #{tpu_custom_call.1} parent=0
    #allocation2 [shape = 'u8[131072]{0}', space=vmem, size = 0x20000, scoped, tag = 'input window, operand 0']
    #allocation3 [shape = 's32[2]{0}', space=sflag, size = 0x8, scoped, tag = 'scoped memory for tpu_custom_call.1']
    #allocation4 [shape = 's32[2]{0}', space=sflag, size = 0x8, scoped, tag = 'scoped memory for tpu_custom_call.1']
    #allocation5 [shape = 'u8[8192]{0}', space=vmem, size = 0x2000, scoped, tag = 'output window, operand 0']
    %8 = vsyncpa [#allocation3], 0
    %s9 = scalar_lea.sflag [#allocation3], 1
    %10 = vsyncpa %s9, 0
    %11 = vsyncpa [#allocation4], 0
    %s12 = scalar_lea.sflag [#allocation4], 1
    %13 = vsyncpa %s12, 0
    loop: start=0, step=1, limit=4
    $region2: #{tpu_custom_call.1} parent=1 // loop_pre_header
      _
    $region3: #{tpu_custom_call.1} parent=1 // loop_header
      %s15 = sphi 0, %s19
      %p16 = scmp.ge.s32.totalorder %s15, 4
      %s25 = sphi 0, %s27
      %s28 = sphi 0, %s25
      %s29 = sphi 0, %s28
      %s45 = sphi 0, %s29
      %s49 = sphi 0, %s49
      %s51 = sphi 0, %s49
      %s52 = sphi 0, %s51
      %s66 = sphi 0, %s52
      %s70 = sphi 0, %s70
      %s72 = sphi 0, %s70
      %s73 = sphi 0, %s72
      %s87 = sphi 0, %s73
      %s93 = sphi 0, %s95
      %s96 = sphi 0, %s93
      %s97 = sphi 0, %s96
      %s113 = sphi 0, %s97
    $region4: #{tpu_custom_call.1} parent=1 // loop_header_branch
      %18 = sbr.rel (%p16) target = $region8
    $region5: #{tpu_custom_call.1} parent=1 // loop_body
      %s20 = ssub.s32 %s15, 1
      %s21 = ssub.s32 %s15, 2
      %s22 = sadd.s32 %s15, 1
      %s23 = ssub.s32 %s15, %s22
      %p24 = scmp.eq.s32.totalorder %s23, 0
      %s26 = sadd.s32 %s25, 1
      %s27 = scalar_select %p24, %s25, %s26
      %p30 = pneg %p24
      %p31 = scmp.eq.s32.totalorder %s15, 1
      %p32 = por %p30, %p31
      %p33 = scmp.ne.s32.totalorder %s25, %s28
      %p34 = scmp.eq.s32.totalorder %s15, 0
      %p35 = por %p33, %p34
      %p36 = scmp.ne.s32.totalorder %s25, %s28
      %p37 = scmp.eq.s32.totalorder %s20, 1
      %p38 = por %p36, %p37
      %p39 = scmp.ne.s32.totalorder %s28, %s29
      %p40 = scmp.eq.s32.totalorder %s20, 0
      %p41 = por %p39, %p40
      %p42 = scmp.ne.s32.totalorder %s28, %s29
      %p43 = scmp.eq.s32.totalorder %s21, 1
      %p44 = por %p42, %p43
      %p46 = scmp.ne.s32.totalorder %s29, %s45
      %p47 = scmp.eq.s32.totalorder %s21, 0
      %p48 = por %p46, %p47
      %s50 = sadd.s32 %s49, 1
      %p53 = scmp.eq.s32.totalorder %s15, 1
      %p54 = scmp.ne.s32.totalorder %s49, %s51
      %p55 = scmp.eq.s32.totalorder %s15, 0
      %p56 = por %p54, %p55
      %p57 = scmp.ne.s32.totalorder %s49, %s51
      %p58 = scmp.eq.s32.totalorder %s20, 1
      %p59 = por %p57, %p58
      %p60 = scmp.ne.s32.totalorder %s51, %s52
      %p61 = scmp.eq.s32.totalorder %s20, 0
      %p62 = por %p60, %p61
      %p63 = scmp.ne.s32.totalorder %s51, %s52
      %p64 = scmp.eq.s32.totalorder %s21, 1
      %p65 = por %p63, %p64
      %p67 = scmp.ne.s32.totalorder %s52, %s66
      %p68 = scmp.eq.s32.totalorder %s21, 0
      %p69 = por %p67, %p68
      %s71 = sadd.s32 %s70, 1
      %p74 = scmp.eq.s32.totalorder %s15, 1
      %p75 = scmp.ne.s32.totalorder %s70, %s72
      %p76 = scmp.eq.s32.totalorder %s15, 0
      %p77 = por %p75, %p76
      %p78 = scmp.ne.s32.totalorder %s70, %s72
      %p79 = scmp.eq.s32.totalorder %s20, 1
      %p80 = por %p78, %p79
      %p81 = scmp.ne.s32.totalorder %s72, %s73
      %p82 = scmp.eq.s32.totalorder %s20, 0
      %p83 = por %p81, %p82
      %p84 = scmp.ne.s32.totalorder %s72, %s73
      %p85 = scmp.eq.s32.totalorder %s21, 1
      %p86 = por %p84, %p85
      %p88 = scmp.ne.s32.totalorder %s73, %s87
      %p89 = scmp.eq.s32.totalorder %s21, 0
      %p90 = por %p88, %p89
      %s91 = ssub.s32 %s15, %s22
      %p92 = scmp.eq.s32.totalorder %s91, 0
      %s94 = sadd.s32 %s93, 1
      %s95 = scalar_select %p92, %s93, %s94
      %p98 = pneg %p92
      %p99 = scmp.eq.s32.totalorder %s15, 1
      %p100 = por %p98, %p99
      %p101 = scmp.ne.s32.totalorder %s93, %s96
      %p102 = scmp.eq.s32.totalorder %s15, 0
      %p103 = por %p101, %p102
      %p104 = scmp.ne.s32.totalorder %s93, %s96
      %p105 = scmp.eq.s32.totalorder %s20, 1
      %p106 = por %p104, %p105
      %p107 = scmp.ne.s32.totalorder %s96, %s97
      %p108 = scmp.eq.s32.totalorder %s20, 0
      %p109 = por %p107, %p108
      %p110 = scmp.ne.s32.totalorder %s96, %s97
      %p111 = scmp.eq.s32.totalorder %s21, 1
      %p112 = por %p110, %p111
      %p114 = scmp.ne.s32.totalorder %s97, %s113
      %p115 = scmp.eq.s32.totalorder %s21, 0
      %p116 = por %p114, %p115
      %p117 = scmp.le.s32.totalorder 1, %s15
      %p118 = scmp.lt.s32.totalorder %s15, 3
      %p119 = pnand %p117, %p118
      %p120 = pneg %p119
      // Predicated region
      $region9: #{tpu_custom_call.1} parent=5 // pred_check
        _
      $region10: #{tpu_custom_call.1} parent=5 // pred_check_branch
        %122 = sbr.rel (%p119) target = $region12
      $region11: #{tpu_custom_call.1} parent=5 // pred_region
        %s123 = ssub.s32 %s15, 1
        // Predicated region
        $region13: #{tpu_custom_call.1} parent=11 // pred_check
          %p124 = pneg %p62
        $region14: #{tpu_custom_call.1} parent=11 // pred_check_branch
          %126 = sbr.rel (%p124) target = $region16
        $region15: #{tpu_custom_call.1} parent=11 // pred_region
          _
        $region16: #{tpu_custom_call.1} parent=11 // pred_fallthru
          _
        // Predicated region
        $region17: #{tpu_custom_call.1} parent=11 // pred_check
          %p127 = pneg %p83
        $region18: #{tpu_custom_call.1} parent=11 // pred_check_branch
          %129 = sbr.rel (%p127) target = $region20
        $region19: #{tpu_custom_call.1} parent=11 // pred_region
          _
        $region20: #{tpu_custom_call.1} parent=11 // pred_fallthru
          _
      $region12: #{tpu_custom_call.1} parent=5 // pred_fallthru
        _
      %p130 = scmp.lt.s32.totalorder %s15, 2
      // Predicated region
      $region21: #{tpu_custom_call.1} parent=5 // pred_check
        %p131 = pneg %p130
      $region22: #{tpu_custom_call.1} parent=5 // pred_check_branch
        %133 = sbr.rel (%p131) target = $region24
      $region23: #{tpu_custom_call.1} parent=5 // pred_region
        // Predicated region
        $region25: #{tpu_custom_call.1} parent=23 // pred_check
          %p134 = pneg %p35
        $region26: #{tpu_custom_call.1} parent=23 // pred_check_branch
          %136 = sbr.rel (%p134) target = $region28
        $region27: #{tpu_custom_call.1} parent=23 // pred_region
          %s137 = sand.u32 %s25, 1
          %s138 = scalar_lea.sflag [#allocation3], %s137
          %s139 = sand.u32 %s25, 1
          %s140 = smul.addr %s139, 128
          %s141 = scalar_lea.vmem [#allocation2], %s140
          %s143 = ssub.s32 2048, 2048
          %144 = vsyncadd %s138, %s143
          %s145 = smul.addr %s15, 64
          %s146 = scalar_lea.hbm %s0, %s145
          %s147 = sshll.u32 %s141, 4
          %s148 = int_to_ptr.vmem [resolvable:$true] %s147
          %153 = dma.hbm_to_vmem [thread:$0]  %s146, 2048, %s148, %s138, 128, 64, 4
        $region28: #{tpu_custom_call.1} parent=23 // pred_fallthru
          _
      $region24: #{tpu_custom_call.1} parent=5 // pred_fallthru
        _
      %p154 = scmp.le.s32.totalorder 1, %s15
      %p155 = scmp.lt.s32.totalorder %s15, 3
      %p156 = pnand %p154, %p155
      %p157 = pneg %p156
      // Predicated region
      $region29: #{tpu_custom_call.1} parent=5 // pred_check
        _
      $region30: #{tpu_custom_call.1} parent=5 // pred_check_branch
        %159 = sbr.rel (%p156) target = $region32
      $region31: #{tpu_custom_call.1} parent=5 // pred_region
        %s160 = ssub.s32 %s15, 1
        %s161 = sand.u32 %s28, 1
        %s162 = scalar_lea.sflag [#allocation3], %s161
        %s163 = sand.u32 %s28, 1
        %s164 = smul.addr %s163, 128
        %s165 = scalar_lea.vmem [#allocation2], %s164
        // Predicated region
        $region33: #{tpu_custom_call.1} parent=31 // pred_check
          %p166 = pneg %p41
        $region34: #{tpu_custom_call.1} parent=31 // pred_check_branch
          %168 = sbr.rel (%p166) target = $region36
        $region35: #{tpu_custom_call.1} parent=31 // pred_region
          %169 = dma.done %s162, 2048
        $region36: #{tpu_custom_call.1} parent=31 // pred_fallthru
          _
        %s170 = sand.u32 %s28, 1
        %s171 = scalar_lea.sflag [#allocation3], %s170
        %s172 = sand.u32 %s28, 1
        %s173 = smul.addr %s172, 128
        %s174 = scalar_lea.vmem [#allocation2], %s173
        %p175 = pneg %p41
        %p176 = pneg %p38
        %p177 = pneg %p62
        %p178 = pneg %p59
        %p179 = pneg %p83
        %p180 = pneg %p80
        %p181 = pneg %p109
        %p182 = pneg %p106
        %s183 = sand.u32 %s96, 1
        %s184 = scalar_lea.sflag [#allocation4], %s183
        %s185 = sand.u32 %s96, 1
        %s186 = smul.addr %s185, 8
        %s187 = scalar_lea.vmem [#allocation5], %s186
        %v189 = vld [vmem:[%s1] sm:$0xff]
        %v190 = vld [vmem:[%s165] sm:$0xf]
        %v191 = vld [vmem:[%s165 + $0x4] sm:$0xf]
        %v192 = vld [vmem:[%s165 + $0x8] sm:$0xf]
        %v193 = vld [vmem:[%s165 + $0xc] sm:$0xf]
        %v194 = vld [vmem:[%s165 + $0x10] sm:$0xf]
        %v195 = vld [vmem:[%s165 + $0x14] sm:$0xf]
        %v196 = vld [vmem:[%s165 + $0x18] sm:$0xf]
        %v197 = vld [vmem:[%s165 + $0x1c] sm:$0xf]
        %v198 = vld [vmem:[%s165 + $0x20] sm:$0xf]
        %v199 = vld [vmem:[%s165 + $0x24] sm:$0xf]
        %v200 = vld [vmem:[%s165 + $0x28] sm:$0xf]
        %v201 = vld [vmem:[%s165 + $0x2c] sm:$0xf]
        %v202 = vld [vmem:[%s165 + $0x30] sm:$0xf]
        %v203 = vld [vmem:[%s165 + $0x34] sm:$0xf]
        %v204 = vld [vmem:[%s165 + $0x38] sm:$0xf]
        %v205 = vld [vmem:[%s165 + $0x3c] sm:$0xf]
        %v206 = vld [vmem:[%s165 + $0x40] sm:$0xf]
        %v207 = vld [vmem:[%s165 + $0x44] sm:$0xf]
        %v208 = vld [vmem:[%s165 + $0x48] sm:$0xf]
        %v209 = vld [vmem:[%s165 + $0x4c] sm:$0xf]
        %v210 = vld [vmem:[%s165 + $0x50] sm:$0xf]
        %v211 = vld [vmem:[%s165 + $0x54] sm:$0xf]
        %v212 = vld [vmem:[%s165 + $0x58] sm:$0xf]
        %v213 = vld [vmem:[%s165 + $0x5c] sm:$0xf]
        %v214 = vld [vmem:[%s165 + $0x60] sm:$0xf]
        %v215 = vld [vmem:[%s165 + $0x64] sm:$0xf]
        %v216 = vld [vmem:[%s165 + $0x68] sm:$0xf]
        %v217 = vld [vmem:[%s165 + $0x6c] sm:$0xf]
        %v218 = vld [vmem:[%s165 + $0x70] sm:$0xf]
        %v219 = vld [vmem:[%s165 + $0x74] sm:$0xf]
        %v220 = vld [vmem:[%s165 + $0x78] sm:$0xf]
        %v221 = vld [vmem:[%s165 + $0x7c] sm:$0xf]
        %v222 = vld [vmem:[%s2] sm:$0xff]
        %224 = vset.pattern.permute.xlu0 0
        %225 = vperm.xlu0 %224, %v222
        %v226 = vpop.permute.xlu0 %225
        %v229 = vunpack.c.l.b16 %v189
        %v230 = vunpack.c.h.b16 %v189
        %v231 = vpack.c.b16 %v229, %v229
        %v232 = vpack.c.b16 %v230, %v230
        %v267 = vunpack.c.l.b16 %v190
        %v268 = vunpack.c.l.b16 %v191
        %v269 = vunpack.c.l.b16 %v192
        %v270 = vunpack.c.l.b16 %v193
        %v271 = vunpack.c.l.b16 %v194
        %v272 = vunpack.c.l.b16 %v195
        %v273 = vunpack.c.l.b16 %v196
        %v274 = vunpack.c.l.b16 %v197
        %v275 = vunpack.c.l.b16 %v198
        %v276 = vunpack.c.l.b16 %v199
        %v277 = vunpack.c.l.b16 %v200
        %v278 = vunpack.c.l.b16 %v201
        %v279 = vunpack.c.l.b16 %v202
        %v280 = vunpack.c.l.b16 %v203
        %v281 = vunpack.c.l.b16 %v204
        %v282 = vunpack.c.l.b16 %v205
        %v283 = vunpack.c.l.b16 %v206
        %v284 = vunpack.c.l.b16 %v207
        %v285 = vunpack.c.l.b16 %v208
        %v286 = vunpack.c.l.b16 %v209
        %v287 = vunpack.c.l.b16 %v210
        %v288 = vunpack.c.l.b16 %v211
        %v289 = vunpack.c.l.b16 %v212
        %v290 = vunpack.c.l.b16 %v213
        %v291 = vunpack.c.l.b16 %v214
        %v292 = vunpack.c.l.b16 %v215
        %v293 = vunpack.c.l.b16 %v216
        %v294 = vunpack.c.l.b16 %v217
        %v295 = vunpack.c.l.b16 %v218
        %v296 = vunpack.c.l.b16 %v219
        %v297 = vunpack.c.l.b16 %v220
        %v298 = vunpack.c.l.b16 %v221
        %v299 = vpack.c.b16 %v268, %v267
        %v300 = vpack.c.b16 %v270, %v269
        %v301 = vpack.c.b16 %v272, %v271
        %v302 = vpack.c.b16 %v274, %v273
        %v303 = vpack.c.b16 %v276, %v275
        %v304 = vpack.c.b16 %v278, %v277
        %v305 = vpack.c.b16 %v280, %v279
        %v306 = vpack.c.b16 %v282, %v281
        %v307 = vpack.c.b16 %v284, %v283
        %v308 = vpack.c.b16 %v286, %v285
        %v309 = vpack.c.b16 %v288, %v287
        %v310 = vpack.c.b16 %v290, %v289
        %v311 = vpack.c.b16 %v292, %v291
        %v312 = vpack.c.b16 %v294, %v293
        %v313 = vpack.c.b16 %v296, %v295
        %v314 = vpack.c.b16 %v298, %v297
        %331 = vmatprep.subr.bf16.mxu0 0
        %332 = vmatpush1.bf16.msra.mxu0 %v306
        %333 = vmatprep.subr.bf16.mxu0 0
        %334 = vmatpush1.bf16.msra.mxu0 %v305
        %335 = vmatprep.subr.bf16.mxu0 0
        %336 = vmatpush1.bf16.msra.mxu0 %v304
        %337 = vmatprep.subr.bf16.mxu0 0
        %338 = vmatpush1.bf16.msra.mxu0 %v303
        %339 = vmatprep.subr.bf16.mxu0 0
        %340 = vmatpush1.bf16.msra.mxu0 %v302
        %341 = vmatprep.subr.bf16.mxu0 0
        %342 = vmatpush1.bf16.msra.mxu0 %v301
        %343 = vmatprep.subr.bf16.mxu0 0
        %344 = vmatpush1.bf16.msra.mxu0 %v300
        %345 = vmatprep.subr.bf16.mxu0 0
        %346 = vmatpush1.bf16.msra.mxu0 %v299
        %347 = vmatprep.subr.bf16.mxu0 0
        %348 = vmatpush2.bf16.msra.mxu0 %v314
        %349 = vmatprep.subr.bf16.mxu0 0
        %350 = vmatpush2.bf16.msra.mxu0 %v313
        %351 = vmatprep.subr.bf16.mxu0 0
        %352 = vmatpush2.bf16.msra.mxu0 %v312
        %353 = vmatprep.subr.bf16.mxu0 0
        %354 = vmatpush2.bf16.msra.mxu0 %v311
        %355 = vmatprep.subr.bf16.mxu0 0
        %356 = vmatpush2.bf16.msra.mxu0 %v310
        %357 = vmatprep.subr.bf16.mxu0 0
        %358 = vmatpush2.bf16.msra.mxu0 %v309
        %359 = vmatprep.subr.bf16.mxu0 0
        %360 = vmatpush2.bf16.msra.mxu0 %v308
        %361 = vmatprep.subr.bf16.mxu0 0
        %362 = vmatpush2.bf16.msra.mxu0 %v307
        %363 = vmatprep.mubr.bf16.mxu0 %v232
        %364 = vmatmul.mubr.bf16.gmra.mxu0 %v231
        %v365 = vpop.f32.mrf.mxu0
        %v366 = vadd.f32 %v226, %v365
        %v367 = vpop.f32.mrf.mxu0
        %v368 = vpop.f32.mrf.mxu0
        %v369 = vpop.f32.mrf.mxu0
        %370 = vdwg.mxu0
        %v371 = vmax.f32 %v366, 0.0
        %372 = vst [vmem:[%s187] sm:$0xff] %v371
        %s373 = sand.u32 %s96, 1
        %s374 = scalar_lea.sflag [#allocation4], %s373
        %s375 = sand.u32 %s96, 1
        %s376 = smul.addr %s375, 8
        %s377 = scalar_lea.vmem [#allocation5], %s376
        // Predicated region
        $region37: #{tpu_custom_call.1} parent=31 // pred_check
          %p378 = pneg %p106
        $region38: #{tpu_custom_call.1} parent=31 // pred_check_branch
          %380 = sbr.rel (%p378) target = $region40
        $region39: #{tpu_custom_call.1} parent=31 // pred_region
          %s382 = ssub.s32 128, 128
          %383 = vsyncadd %s374, %s382
          %s384 = smul.addr %s20, 128
          %s385 = scalar_lea.hbm %s3, %s384
          %s387 = sshll.u32 %s377, 4
          %s388 = int_to_ptr.vmem [resolvable:$true] %s387
          %390 = dma.vmem_to_hbm [thread:$0]  %s388, 128, %s385, %s374
        $region40: #{tpu_custom_call.1} parent=31 // pred_fallthru
          _
      $region32: #{tpu_custom_call.1} parent=5 // pred_fallthru
        _
      %p391 = scmp.le.s32.totalorder 2, %s15
      // Predicated region
      $region41: #{tpu_custom_call.1} parent=5 // pred_check
        %p392 = pneg %p391
      $region42: #{tpu_custom_call.1} parent=5 // pred_check_branch
        %394 = sbr.rel (%p392) target = $region44
      $region43: #{tpu_custom_call.1} parent=5 // pred_region
        %s395 = ssub.s32 %s15, 2
        // Predicated region
        $region45: #{tpu_custom_call.1} parent=43 // pred_check
          %p396 = pneg %p112
        $region46: #{tpu_custom_call.1} parent=43 // pred_check_branch
          %398 = sbr.rel (%p396) target = $region48
        $region47: #{tpu_custom_call.1} parent=43 // pred_region
          %s399 = sand.u32 %s97, 1
          %s400 = scalar_lea.sflag [#allocation4], %s399
          %s401 = sand.u32 %s97, 1
          %s402 = smul.addr %s401, 8
          %s403 = scalar_lea.vmem [#allocation5], %s402
          %404 = dma.done %s400, 128
        $region48: #{tpu_custom_call.1} parent=43 // pred_fallthru
          _
      $region44: #{tpu_custom_call.1} parent=5 // pred_fallthru
        _
    $region6: #{tpu_custom_call.1} parent=1 // loop_footer
      %s19 = sadd.s32 1, %s15
    $region7: #{tpu_custom_call.1} parent=1 // loop_footer_branch
      %14 = sbr.rel target = $region3
    $region8: #{tpu_custom_call.1} parent=1 // loop_exit
      _
    %405 = vsyncpa [#allocation3], 1
    %s406 = scalar_lea.sflag [#allocation3], 1
    %407 = vsyncpa %s406, 1
    %408 = vsyncpa [#allocation4], 1
    %s409 = scalar_lea.sflag [#allocation4], 1
    %410 = vsyncpa %s409, 1

</llo_original>
